<compile_context>
chip_gen: v5e
topology: v5e:2x2
jax: 0.10.0
libtpu: 0.0.40
codegen_flags: <defaults>
</compile_context>

<pallas_src>
import functools

import jax
import jax.numpy as jnp
from jax.experimental import pallas as pl
from jax.experimental.pallas import tpu as pltpu

EPS_MSG = 1e-7     # GENConv message eps
EPS_BN = 1e-5      # BatchNorm1d eps
EPS_DENOM = 1e-12  # softmax denominator guard (isolated nodes -> agg = 0)


# ----------------------------------------------------------------------------
# Fused encoder kernel
# ----------------------------------------------------------------------------
def encoder_kernel(t_ref, x_ref, adj_ref,
                   w1a_ref, b1a_ref, w2a_ref,
                   w1h_ref, b1h_ref, w2h_ref,
                   out_ref, *, n_aggr, hidden):
    """All n_aggr GENConv layers + mu/logstd heads; x and adj stay VMEM-resident.

    Softmax aggregation per layer is ONE lane-packed MXU matmul:
      rhs = [exp(t*msg - m) | exp(t*msg - m)*msg]   (bf16, 2H lanes)
      res = adj @ rhs                               (f32 accumulation)
      agg = res[:, H:] * 1/(res[:, :H] + eps)
    The global per-channel max m is exact for softmax (shift invariance); exp
    may underflow only if a destination's local max is far below the global one
    (benign for ReLU'd messages and t ~ 1).
    """
    H = hidden
    adj = adj_ref[...]                                   # [N, N] bf16 (0/1)
    x = x_ref[...]                                       # [N, H] f32

    # --- n_aggr GENConv aggregation layers (unrolled; n_aggr is small -- switch
    #     to lax.fori_loop(..., unroll=True) if it grows beyond ~4).
    for l in range(n_aggr):
        t = t_ref[l]                                     # scalar (SMEM)
        msg = jnp.maximum(x, 0.0) + EPS_MSG              # [N, H]
        scores = t * msg
        m = jnp.max(scores, axis=0, keepdims=True)       # [1, H] global per-channel max
        e = jnp.exp(scores - m)                          # [N, H], <= 1
        # Fused denom|numer RHS: one 2H-lane MXU pass instead of two H-lane ones.
        rhs = jnp.concatenate([e, e * msg], axis=1).astype(jnp.bfloat16)   # [N, 2H]
        res = jnp.dot(adj, rhs, preferred_element_type=jnp.float32)        # [N, 2H]
        denom = res[:, :H]
        numer = res[:, H:]
        # Isolated nodes: numer == 0 exactly -> agg -> 0 (no NaN branch).
        h = numer * pl.reciprocal(denom + EPS_DENOM, approx=True) + x      # agg + residual
        # MLP: Linear(H,2H,b=F) + folded eval-BN -> ReLU -> Linear(2H,H,b=F)
        h1 = jnp.dot(h.astype(jnp.bfloat16), w1a_ref[l],
                     preferred_element_type=jnp.float32) + b1a_ref[l]      # [N, 2H]
        h1 = jnp.maximum(h1, 0.0)
        y = jnp.dot(h1.astype(jnp.bfloat16), w2a_ref[l],
                    preferred_element_type=jnp.float32)                    # [N, H]
        x = jnp.maximum(y, 0.0)   # outer torch.relu; dropout = identity at eval

    # --- mu & logstd heads: ONE 4H-lane (=128 for H=32) adjacency matmul ------
    t_mu = t_ref[n_aggr]
    t_ls = t_ref[n_aggr + 1]
    msg = jnp.maximum(x, 0.0) + EPS_MSG                                    # shared message
    e_mu = jnp.exp(t_mu * msg - jnp.max(t_mu * msg, axis=0, keepdims=True))
    e_ls = jnp.exp(t_ls * msg - jnp.max(t_ls * msg, axis=0, keepdims=True))
    # column order: [denom_mu | denom_ls | numer_mu | numer_ls]
    rhs = jnp.concatenate([e_mu, e_ls, e_mu * msg, e_ls * msg],
                          axis=1).astype(jnp.bfloat16)                     # [N, 4H]
    res = jnp.dot(adj, rhs, preferred_element_type=jnp.float32)            # [N, 4H]
    denom = res[:, :2 * H]
    numer = res[:, 2 * H:]
    x2 = jnp.concatenate([x, x], axis=1)                                   # [N, 2H]
    h = numer * pl.reciprocal(denom + EPS_DENOM, approx=True) + x2         # [N,2H]=[h_mu|h_ls]
    # block-diagonal packed MLP: [N,2H]x[2H,4H] -> folded-BN + ReLU -> [N,4H]x[4H,OUT]
    h1 = jnp.dot(h.astype(jnp.bfloat16), w1h_ref[...],
                 preferred_element_type=jnp.float32) + b1h_ref[...]        # [N, 4H]
    h1 = jnp.maximum(h1, 0.0)
    # w2h is column-padded to a 128-lane multiple -> unmasked lane-dense store;
    # columns [0, 2H) hold [mu | logstd], the rest are exact zeros.
    out_ref[...] = jnp.dot(h1.astype(jnp.bfloat16), w2h_ref[...],
                           preferred_element_type=jnp.float32)


# ----------------------------------------------------------------------------
# Parameter construction / packing (plain JAX glue)
# ----------------------------------------------------------------------------
def init_genconv_params(key, hidden, expansion=2):
    """Synthetic parameters for one GENConv (num_layers=2 MLP: H -> 2H -> H)."""
    h2 = hidden * expansion
    k1, k2 = jax.random.split(key)
    return dict(
        t=jnp.ones((1,), jnp.float32),                               # learn_t init = 1.0
        w1=jax.random.normal(k1, (hidden, h2), jnp.float32) * 0.1,   # Linear(H, 2H), bias=False
        w2=jax.random.normal(k2, (h2, hidden), jnp.float32) * 0.1,   # Linear(2H, H), bias=False
        gamma=jnp.ones((1, h2), jnp.float32),                        # BatchNorm1d affine
        beta=jnp.zeros((1, h2), jnp.float32),
        mean=jnp.zeros((1, h2), jnp.float32),                        # running stats (eval)
        var=jnp.ones((1, h2), jnp.float32),
    )


def init_encoder_params(key, hidden, n_aggr):
    keys = jax.random.split(key, n_aggr + 2)
    return dict(
        aggrs=[init_genconv_params(keys[i], hidden) for i in range(n_aggr)],
        mu=init_genconv_params(keys[n_aggr], hidden),
        logstd=init_genconv_params(keys[n_aggr + 1], hidden),
    )


def _fold_bn(p):
    """Fold eval-mode BatchNorm into the first MLP Linear: h@w1' + b'."""
    scale = p["gamma"] * jax.lax.rsqrt(p["var"] + EPS_BN)            # [1, 2H]
    return p["w1"] * scale, p["beta"] - p["mean"] * scale


def _block_diag(a, b):
    ra, ca = a.shape
    rb, cb = b.shape
    top = jnp.concatenate([a, jnp.zeros((ra, cb), a.dtype)], axis=1)
    bot = jnp.concatenate([jnp.zeros((rb, ca), b.dtype), b], axis=1)
    return jnp.concatenate([top, bot], axis=0)


def pack_encoder_params(params):
    """Stack/fold/cast/pad the per-layer params into the fused-kernel layout."""
    w1a, b1a, w2a = [], [], []
    for p in params["aggrs"]:
        w1f, b1f = _fold_bn(p)
        w1a.append(w1f)
        b1a.append(b1f)
        w2a.append(p["w2"])
    w1a = jnp.stack(w1a).astype(jnp.bfloat16)                        # [L, H, 2H]
    b1a = jnp.stack(b1a)                                             # [L, 1, 2H] f32
    w2a = jnp.stack(w2a).astype(jnp.bfloat16)                        # [L, 2H, H]

    w1m, b1m = _fold_bn(params["mu"])
    w1s, b1s = _fold_bn(params["logstd"])
    w1h = _block_diag(w1m, w1s).astype(jnp.bfloat16)                 # [2H, 4H]
    b1h = jnp.concatenate([b1m, b1s], axis=1)                        # [1, 4H] f32
    w2h = _block_diag(params["mu"]["w2"],
                      params["logstd"]["w2"])                        # [4H, 2H]
    # Column-pad the final projection to a 128-lane multiple (lane-dense store).
    out_w = ((w2h.shape[1] + 127) // 128) * 128
    if out_w > w2h.shape[1]:
        w2h = jnp.concatenate(
            [w2h, jnp.zeros((w2h.shape[0], out_w - w2h.shape[1]), w2h.dtype)],
            axis=1)
    w2h = w2h.astype(jnp.bfloat16)                                   # [4H, out_w]

    t_all = jnp.concatenate([p["t"] for p in params["aggrs"]]
                            + [params["mu"]["t"], params["logstd"]["t"]])  # [L+2]
    return dict(t=t_all, w1a=w1a, b1a=b1a, w2a=w2a, w1h=w1h, b1h=b1h, w2h=w2h)


# ----------------------------------------------------------------------------
# Forward: single fused pallas_call
# ----------------------------------------------------------------------------
@functools.partial(jax.jit, static_argnames=("n_aggr",))
def gcn_encoder_vae_forward(x, adj, packed, *, n_aggr):
    n, h = x.shape
    out_w = packed["w2h"].shape[1]
    # adj should be built as bf16 (0/1 exact) at graph-construction time; this
    # guard is a no-op on the fast path and only fires for mis-typed callers.
    if adj.dtype != jnp.bfloat16:
        adj = adj.astype(jnp.bfloat16)

    # Advisory cost estimate so XLA can schedule/overlap the custom call.
    flops = int(
        2 * n * n * (2 * h) * n_aggr                                  # aggr adj matmuls
        + 2 * n * n * (4 * h)                                         # head adj matmul
        + n_aggr * (2 * n * h * (2 * h) + 2 * n * (2 * h) * h)        # aggr MLPs
        + 2 * n * (2 * h) * (4 * h) + 2 * n * (4 * h) * out_w)        # head MLP
    transcendentals = int((n_aggr + 2) * n * h)                       # exp (+ reciprocals)
    bytes_accessed = int(
        adj.size * 2 + x.size * 4 + n * out_w * 4
        + sum(int(packed[k].size) * packed[k].dtype.itemsize
              for k in ("t", "w1a", "b1a", "w2a", "w1h", "b1h", "w2h")))

    vmem = pl.BlockSpec(memory_space=pltpu.MemorySpace.VMEM)
    smem = pl.BlockSpec(memory_space=pltpu.MemorySpace.SMEM)
    out = pl.pallas_call(
        functools.partial(encoder_kernel, n_aggr=n_aggr, hidden=h),
        out_shape=jax.ShapeDtypeStruct((n, out_w), jnp.float32),
        in_specs=[smem, vmem, vmem, vmem, vmem, vmem, vmem, vmem, vmem],
        out_specs=vmem,
        cost_estimate=pl.CostEstimate(flops=flops,
                                      transcendentals=transcendentals,
                                      bytes_accessed=bytes_accessed),
    )(packed["t"], x, adj,
      packed["w1a"], packed["b1a"], packed["w2a"],
      packed["w1h"], packed["b1h"], packed["w2h"])
    return out[:, :h], out[:, h:2 * h]


# ----------------------------------------------------------------------------
# Plain-JAX f32 reference (per-destination softmax) for a loose numerics check
# ----------------------------------------------------------------------------
def _genconv_ref(p, x, adj):
    msg = jnp.maximum(x, 0.0) + EPS_MSG
    scores = p["t"][0] * msg
    mask = adj[:, :, None] > 0                                       # [Ndst, Nsrc, 1]
    s = jnp.where(mask, scores[None, :, :], -jnp.inf)
    m = jnp.max(s, axis=1, keepdims=True)
    m = jnp.where(jnp.isfinite(m), m, 0.0)
    e = jnp.where(mask, jnp.exp(s - m), 0.0)
    denom = jnp.sum(e, axis=1)
    numer = jnp.sum(e * msg[None, :, :], axis=1)
    agg = jnp.where(denom > 0, numer / jnp.maximum(denom, 1e-30), 0.0)
    h = agg + x
    h1 = h @ p["w1"]
    h1 = (h1 - p["mean"]) * p["gamma"] * jax.lax.rsqrt(p["var"] + EPS_BN) + p["beta"]
    h1 = jnp.maximum(h1, 0.0)
    return h1 @ p["w2"]


if __name__ == "__main__":
    N = 16            # nodes
    H = 32            # hidden_channels
    N_AGGR = 2        # number of aggregation GENConv layers
    # n_layers = 2 (GENConv MLP: H -> 2H -> H), dropout = 0.1 (identity at eval),
    # bias = False

    root = jax.random.PRNGKey(0)
    k_x, k_e, k_p = jax.random.split(root, 3)

    # node features [N, H]
    x = jax.random.normal(k_x, (N, H), jnp.float32)

    # edge_index [2, E]: bidirectional ring + a few random edges (src -> dst)
    ar = jnp.arange(N)
    src = jnp.concatenate([ar, (ar + 1) % N])
    dst = jnp.concatenate([(ar + 1) % N, ar])
    rnd = jax.random.randint(k_e, (2, 16), 0, N)
    src = jnp.concatenate([src, rnd[0]])
    dst = jnp.concatenate([dst, rnd[1]])
    edge_index = jnp.stack([src, dst])                               # [2, 48]

    # dense adjacency mask A[dst, src], pre-cast to bf16 (0/1 exact) so the
    # kernel's only O(N^2) operand is never re-cast per forward call.
    adj = jnp.zeros((N, N), jnp.bfloat16).at[dst, src].set(1.0)

    params = init_encoder_params(k_p, H, N_AGGR)
    packed = pack_encoder_params(params)

    mu, logstd = gcn_encoder_vae_forward(x, adj, packed, n_aggr=N_AGGR)
    jax.block_until_ready((mu, logstd))
    assert mu.shape == (N, H) and logstd.shape == (N, H)
    assert bool(jnp.all(jnp.isfinite(mu))) and bool(jnp.all(jnp.isfinite(logstd)))

    # Loose-tolerance check vs an f32 reference (bf16 MXU + approx reciprocal
    # => expect ~1e-2-level drift, not exact match).
    adj_f32 = adj.astype(jnp.float32)
    xr = x
    for p in params["aggrs"]:
        xr = jnp.maximum(_genconv_ref(p, xr, adj_f32), 0.0)
    mu_ref = _genconv_ref(params["mu"], xr, adj_f32)
    ls_ref = _genconv_ref(params["logstd"], xr, adj_f32)
    assert bool(jnp.max(jnp.abs(mu - mu_ref)) < 0.1)
    assert bool(jnp.max(jnp.abs(logstd - ls_ref)) < 0.1)

    print("KERNEL_OK")
</pallas_src>

<mosaic_0001>
module attributes {stable_mosaic.version = 11 : i64} {
  func.func @encoder_kernel(%arg0: memref<4xf32, #tpu.memory_space<smem>>, %arg1: memref<16x32xf32, #tpu.memory_space<vmem>>, %arg2: memref<16x16xbf16, #tpu.memory_space<vmem>>, %arg3: memref<2x32x64xbf16, #tpu.memory_space<vmem>>, %arg4: memref<2x1x64xf32, #tpu.memory_space<vmem>>, %arg5: memref<2x64x32xbf16, #tpu.memory_space<vmem>>, %arg6: memref<64x128xbf16, #tpu.memory_space<vmem>>, %arg7: memref<1x128xf32, #tpu.memory_space<vmem>>, %arg8: memref<128x128xbf16, #tpu.memory_space<vmem>>, %arg9: memref<16x128xf32, #tpu.memory_space<vmem>>) attributes {dimension_semantics = [], scalar_prefetch = 0 : i64, scratch_operands = 0 : i64, tpu.core_type = #tpu.core_type<tc>} {
    %c0 = arith.constant 0 : index
    %c0_0 = arith.constant 0 : index
    %0 = vector.load %arg2[%c0, %c0_0] : memref<16x16xbf16, #tpu.memory_space<vmem>>, vector<16x16xbf16>
    %c0_1 = arith.constant 0 : index
    %c0_2 = arith.constant 0 : index
    %1 = vector.load %arg1[%c0_1, %c0_2] : memref<16x32xf32, #tpu.memory_space<vmem>>, vector<16x32xf32>
    %c0_3 = arith.constant 0 : index
    %2 = memref.load %arg0[%c0_3] : memref<4xf32, #tpu.memory_space<smem>>
    %cst = arith.constant 0.000000e+00 : f32
    %3 = vector.broadcast %cst : f32 to vector<16x32xf32>
    %4 = arith.maximumf %1, %3 : vector<16x32xf32>
    %cst_4 = arith.constant 1.000000e-07 : f32
    %5 = vector.broadcast %cst_4 : f32 to vector<16x32xf32>
    %6 = arith.addf %4, %5 : vector<16x32xf32>
    %7 = vector.broadcast %2 : f32 to vector<16x32xf32>
    %8 = arith.mulf %7, %6 : vector<16x32xf32>
    %cst_5 = arith.constant dense<0xFF800000> : vector<32xf32>
    %9 = vector.multi_reduction <maximumf>, %8, %cst_5 [0] : vector<16x32xf32> to vector<32xf32>
    %10 = vector.shape_cast %9 : vector<32xf32> to vector<1x32xf32>
    %11 = vector.broadcast %10 : vector<1x32xf32> to vector<16x32xf32>
    %12 = arith.subf %8, %11 : vector<16x32xf32>
    %13 = math.exp %12 : vector<16x32xf32>
    %14 = arith.mulf %13, %6 : vector<16x32xf32>
    %15 = tpu.concatenate %13, %14 in 1 : vector<16x32xf32>, vector<16x32xf32> -> vector<16x64xf32>
    %16 = arith.truncf %15 : vector<16x64xf32> to vector<16x64xbf16>
    %cst_6 = arith.constant dense<0.000000e+00> : vector<16x64xf32>
    %17 = tpu.matmul %0, %16, %cst_6 {dimension_numbers = #tpu.dot_dimension_numbers<[1], [0], [0], [1], [0, 0, 1, 1], [], []>} : vector<16x16xbf16>, vector<16x64xbf16>, vector<16x64xf32> -> vector<16x64xf32>
    %18 = vector.extract_strided_slice %17 {offsets = [0, 0], sizes = [16, 32], strides = [1, 1]} : vector<16x64xf32> to vector<16x32xf32>
    %19 = vector.extract_strided_slice %17 {offsets = [0, 32], sizes = [16, 32], strides = [1, 1]} : vector<16x64xf32> to vector<16x32xf32>
    %cst_7 = arith.constant 9.99999996E-13 : f32
    %20 = vector.broadcast %cst_7 : f32 to vector<16x32xf32>
    %21 = arith.addf %18, %20 : vector<16x32xf32>
    %22 = tpu.reciprocal %21 {approx = true} : vector<16x32xf32> -> vector<16x32xf32>
    %23 = arith.mulf %19, %22 : vector<16x32xf32>
    %24 = arith.addf %23, %1 : vector<16x32xf32>
    %25 = arith.truncf %24 : vector<16x32xf32> to vector<16x32xbf16>
    %c0_8 = arith.constant 0 : index
    %c0_9 = arith.constant 0 : index
    %c0_10 = arith.constant 0 : index
    %26 = vector.load %arg3[%c0_8, %c0_9, %c0_10] : memref<2x32x64xbf16, #tpu.memory_space<vmem>>, vector<1x32x64xbf16>
    %27 = vector.shape_cast %26 : vector<1x32x64xbf16> to vector<32x64xbf16>
    %cst_11 = arith.constant dense<0.000000e+00> : vector<16x64xf32>
    %28 = tpu.matmul %25, %27, %cst_11 {dimension_numbers = #tpu.dot_dimension_numbers<[1], [0], [0], [1], [0, 0, 1, 1], [], []>} : vector<16x32xbf16>, vector<32x64xbf16>, vector<16x64xf32> -> vector<16x64xf32>
    %c0_12 = arith.constant 0 : index
    %c0_13 = arith.constant 0 : index
    %c0_14 = arith.constant 0 : index
    %29 = vector.load %arg4[%c0_12, %c0_13, %c0_14] : memref<2x1x64xf32, #tpu.memory_space<vmem>>, vector<1x1x64xf32>
    %30 = vector.shape_cast %29 : vector<1x1x64xf32> to vector<1x64xf32>
    %31 = vector.broadcast %30 : vector<1x64xf32> to vector<16x64xf32>
    %32 = arith.addf %28, %31 : vector<16x64xf32>
    %cst_15 = arith.constant 0.000000e+00 : f32
    %33 = vector.broadcast %cst_15 : f32 to vector<16x64xf32>
    %34 = arith.maximumf %32, %33 : vector<16x64xf32>
    %35 = arith.truncf %34 : vector<16x64xf32> to vector<16x64xbf16>
    %c0_16 = arith.constant 0 : index
    %c0_17 = arith.constant 0 : index
    %c0_18 = arith.constant 0 : index
    %36 = vector.load %arg5[%c0_16, %c0_17, %c0_18] : memref<2x64x32xbf16, #tpu.memory_space<vmem>>, vector<1x64x32xbf16>
    %37 = vector.shape_cast %36 : vector<1x64x32xbf16> to vector<64x32xbf16>
    %cst_19 = arith.constant dense<0.000000e+00> : vector<16x32xf32>
    %38 = tpu.matmul %35, %37, %cst_19 {dimension_numbers = #tpu.dot_dimension_numbers<[1], [0], [0], [1], [0, 0, 1, 1], [], []>} : vector<16x64xbf16>, vector<64x32xbf16>, vector<16x32xf32> -> vector<16x32xf32>
    %cst_20 = arith.constant 0.000000e+00 : f32
    %39 = vector.broadcast %cst_20 : f32 to vector<16x32xf32>
    %40 = arith.maximumf %38, %39 : vector<16x32xf32>
    %c1 = arith.constant 1 : index
    %41 = memref.load %arg0[%c1] : memref<4xf32, #tpu.memory_space<smem>>
    %cst_21 = arith.constant 0.000000e+00 : f32
    %42 = vector.broadcast %cst_21 : f32 to vector<16x32xf32>
    %43 = arith.maximumf %40, %42 : vector<16x32xf32>
    %cst_22 = arith.constant 1.000000e-07 : f32
    %44 = vector.broadcast %cst_22 : f32 to vector<16x32xf32>
    %45 = arith.addf %43, %44 : vector<16x32xf32>
    %46 = vector.broadcast %41 : f32 to vector<16x32xf32>
    %47 = arith.mulf %46, %45 : vector<16x32xf32>
    %cst_23 = arith.constant dense<0xFF800000> : vector<32xf32>
    %48 = vector.multi_reduction <maximumf>, %47, %cst_23 [0] : vector<16x32xf32> to vector<32xf32>
    %49 = vector.shape_cast %48 : vector<32xf32> to vector<1x32xf32>
    %50 = vector.broadcast %49 : vector<1x32xf32> to vector<16x32xf32>
    %51 = arith.subf %47, %50 : vector<16x32xf32>
    %52 = math.exp %51 : vector<16x32xf32>
    %53 = arith.mulf %52, %45 : vector<16x32xf32>
    %54 = tpu.concatenate %52, %53 in 1 : vector<16x32xf32>, vector<16x32xf32> -> vector<16x64xf32>
    %55 = arith.truncf %54 : vector<16x64xf32> to vector<16x64xbf16>
    %cst_24 = arith.constant dense<0.000000e+00> : vector<16x64xf32>
    %56 = tpu.matmul %0, %55, %cst_24 {dimension_numbers = #tpu.dot_dimension_numbers<[1], [0], [0], [1], [0, 0, 1, 1], [], []>} : vector<16x16xbf16>, vector<16x64xbf16>, vector<16x64xf32> -> vector<16x64xf32>
    %57 = vector.extract_strided_slice %56 {offsets = [0, 0], sizes = [16, 32], strides = [1, 1]} : vector<16x64xf32> to vector<16x32xf32>
    %58 = vector.extract_strided_slice %56 {offsets = [0, 32], sizes = [16, 32], strides = [1, 1]} : vector<16x64xf32> to vector<16x32xf32>
    %cst_25 = arith.constant 9.99999996E-13 : f32
    %59 = vector.broadcast %cst_25 : f32 to vector<16x32xf32>
    %60 = arith.addf %57, %59 : vector<16x32xf32>
    %61 = tpu.reciprocal %60 {approx = true} : vector<16x32xf32> -> vector<16x32xf32>
    %62 = arith.mulf %58, %61 : vector<16x32xf32>
    %63 = arith.addf %62, %40 : vector<16x32xf32>
    %64 = arith.truncf %63 : vector<16x32xf32> to vector<16x32xbf16>
    %c1_26 = arith.constant 1 : index
    %c0_27 = arith.constant 0 : index
    %c0_28 = arith.constant 0 : index
    %65 = vector.load %arg3[%c1_26, %c0_27, %c0_28] : memref<2x32x64xbf16, #tpu.memory_space<vmem>>, vector<1x32x64xbf16>
    %66 = vector.shape_cast %65 : vector<1x32x64xbf16> to vector<32x64xbf16>
    %cst_29 = arith.constant dense<0.000000e+00> : vector<16x64xf32>
    %67 = tpu.matmul %64, %66, %cst_29 {dimension_numbers = #tpu.dot_dimension_numbers<[1], [0], [0], [1], [0, 0, 1, 1], [], []>} : vector<16x32xbf16>, vector<32x64xbf16>, vector<16x64xf32> -> vector<16x64xf32>
    %c1_30 = arith.constant 1 : index
    %c0_31 = arith.constant 0 : index
    %c0_32 = arith.constant 0 : index
    %68 = vector.load %arg4[%c1_30, %c0_31, %c0_32] : memref<2x1x64xf32, #tpu.memory_space<vmem>>, vector<1x1x64xf32>
    %69 = vector.shape_cast %68 : vector<1x1x64xf32> to vector<1x64xf32>
    %70 = vector.broadcast %69 : vector<1x64xf32> to vector<16x64xf32>
    %71 = arith.addf %67, %70 : vector<16x64xf32>
    %cst_33 = arith.constant 0.000000e+00 : f32
    %72 = vector.broadcast %cst_33 : f32 to vector<16x64xf32>
    %73 = arith.maximumf %71, %72 : vector<16x64xf32>
    %74 = arith.truncf %73 : vector<16x64xf32> to vector<16x64xbf16>
    %c1_34 = arith.constant 1 : index
    %c0_35 = arith.constant 0 : index
    %c0_36 = arith.constant 0 : index
    %75 = vector.load %arg5[%c1_34, %c0_35, %c0_36] : memref<2x64x32xbf16, #tpu.memory_space<vmem>>, vector<1x64x32xbf16>
    %76 = vector.shape_cast %75 : vector<1x64x32xbf16> to vector<64x32xbf16>
    %cst_37 = arith.constant dense<0.000000e+00> : vector<16x32xf32>
    %77 = tpu.matmul %74, %76, %cst_37 {dimension_numbers = #tpu.dot_dimension_numbers<[1], [0], [0], [1], [0, 0, 1, 1], [], []>} : vector<16x64xbf16>, vector<64x32xbf16>, vector<16x32xf32> -> vector<16x32xf32>
    %cst_38 = arith.constant 0.000000e+00 : f32
    %78 = vector.broadcast %cst_38 : f32 to vector<16x32xf32>
    %79 = arith.maximumf %77, %78 : vector<16x32xf32>
    %c2 = arith.constant 2 : index
    %80 = memref.load %arg0[%c2] : memref<4xf32, #tpu.memory_space<smem>>
    %c3 = arith.constant 3 : index
    %81 = memref.load %arg0[%c3] : memref<4xf32, #tpu.memory_space<smem>>
    %cst_39 = arith.constant 0.000000e+00 : f32
    %82 = vector.broadcast %cst_39 : f32 to vector<16x32xf32>
    %83 = arith.maximumf %79, %82 : vector<16x32xf32>
    %cst_40 = arith.constant 1.000000e-07 : f32
    %84 = vector.broadcast %cst_40 : f32 to vector<16x32xf32>
    %85 = arith.addf %83, %84 : vector<16x32xf32>
    %86 = vector.broadcast %80 : f32 to vector<16x32xf32>
    %87 = arith.mulf %86, %85 : vector<16x32xf32>
    %88 = vector.broadcast %80 : f32 to vector<16x32xf32>
    %89 = arith.mulf %88, %85 : vector<16x32xf32>
    %cst_41 = arith.constant dense<0xFF800000> : vector<32xf32>
    %90 = vector.multi_reduction <maximumf>, %89, %cst_41 [0] : vector<16x32xf32> to vector<32xf32>
    %91 = vector.shape_cast %90 : vector<32xf32> to vector<1x32xf32>
    %92 = vector.broadcast %91 : vector<1x32xf32> to vector<16x32xf32>
    %93 = arith.subf %87, %92 : vector<16x32xf32>
    %94 = math.exp %93 : vector<16x32xf32>
    %95 = vector.broadcast %81 : f32 to vector<16x32xf32>
    %96 = arith.mulf %95, %85 : vector<16x32xf32>
    %97 = vector.broadcast %81 : f32 to vector<16x32xf32>
    %98 = arith.mulf %97, %85 : vector<16x32xf32>
    %cst_42 = arith.constant dense<0xFF800000> : vector<32xf32>
    %99 = vector.multi_reduction <maximumf>, %98, %cst_42 [0] : vector<16x32xf32> to vector<32xf32>
    %100 = vector.shape_cast %99 : vector<32xf32> to vector<1x32xf32>
    %101 = vector.broadcast %100 : vector<1x32xf32> to vector<16x32xf32>
    %102 = arith.subf %96, %101 : vector<16x32xf32>
    %103 = math.exp %102 : vector<16x32xf32>
    %104 = arith.mulf %94, %85 : vector<16x32xf32>
    %105 = arith.mulf %103, %85 : vector<16x32xf32>
    %106 = tpu.concatenate %94, %103, %104, %105 in 1 : vector<16x32xf32>, vector<16x32xf32>, vector<16x32xf32>, vector<16x32xf32> -> vector<16x128xf32>
    %107 = arith.truncf %106 : vector<16x128xf32> to vector<16x128xbf16>
    %cst_43 = arith.constant dense<0.000000e+00> : vector<16x128xf32>
    %108 = tpu.matmul %0, %107, %cst_43 {dimension_numbers = #tpu.dot_dimension_numbers<[1], [0], [0], [1], [0, 0, 1, 1], [], []>} : vector<16x16xbf16>, vector<16x128xbf16>, vector<16x128xf32> -> vector<16x128xf32>
    %109 = vector.extract_strided_slice %108 {offsets = [0, 0], sizes = [16, 64], strides = [1, 1]} : vector<16x128xf32> to vector<16x64xf32>
    %110 = vector.extract_strided_slice %108 {offsets = [0, 64], sizes = [16, 64], strides = [1, 1]} : vector<16x128xf32> to vector<16x64xf32>
    %111 = tpu.concatenate %79, %79 in 1 : vector<16x32xf32>, vector<16x32xf32> -> vector<16x64xf32>
    %cst_44 = arith.constant 9.99999996E-13 : f32
    %112 = vector.broadcast %cst_44 : f32 to vector<16x64xf32>
    %113 = arith.addf %109, %112 : vector<16x64xf32>
    %114 = tpu.reciprocal %113 {approx = true} : vector<16x64xf32> -> vector<16x64xf32>
    %115 = arith.mulf %110, %114 : vector<16x64xf32>
    %116 = arith.addf %115, %111 : vector<16x64xf32>
    %117 = arith.truncf %116 : vector<16x64xf32> to vector<16x64xbf16>
    %c0_45 = arith.constant 0 : index
    %c0_46 = arith.constant 0 : index
    %118 = vector.load %arg6[%c0_45, %c0_46] : memref<64x128xbf16, #tpu.memory_space<vmem>>, vector<64x128xbf16>
    %cst_47 = arith.constant dense<0.000000e+00> : vector<16x128xf32>
    %119 = tpu.matmul %117, %118, %cst_47 {dimension_numbers = #tpu.dot_dimension_numbers<[1], [0], [0], [1], [0, 0, 1, 1], [], []>} : vector<16x64xbf16>, vector<64x128xbf16>, vector<16x128xf32> -> vector<16x128xf32>
    %c0_48 = arith.constant 0 : index
    %c0_49 = arith.constant 0 : index
    %120 = vector.load %arg7[%c0_48, %c0_49] : memref<1x128xf32, #tpu.memory_space<vmem>>, vector<1x128xf32>
    %121 = vector.broadcast %120 : vector<1x128xf32> to vector<16x128xf32>
    %122 = arith.addf %119, %121 : vector<16x128xf32>
    %cst_50 = arith.constant 0.000000e+00 : f32
    %123 = vector.broadcast %cst_50 : f32 to vector<16x128xf32>
    %124 = arith.maximumf %122, %123 : vector<16x128xf32>
    %125 = arith.truncf %124 : vector<16x128xf32> to vector<16x128xbf16>
    %c0_51 = arith.constant 0 : index
    %c0_52 = arith.constant 0 : index
    %126 = vector.load %arg8[%c0_51, %c0_52] : memref<128x128xbf16, #tpu.memory_space<vmem>>, vector<128x128xbf16>
    %cst_53 = arith.constant dense<0.000000e+00> : vector<16x128xf32>
    %127 = tpu.matmul %125, %126, %cst_53 {dimension_numbers = #tpu.dot_dimension_numbers<[1], [0], [0], [1], [0, 0, 1, 1], [], []>} : vector<16x128xbf16>, vector<128x128xbf16>, vector<16x128xf32> -> vector<16x128xf32>
    %c0_54 = arith.constant 0 : index
    %c0_55 = arith.constant 0 : index
    %128 = vector.load %arg9[%c0_54, %c0_55] : memref<16x128xf32, #tpu.memory_space<vmem>>, vector<16x128xf32>
    tpu.vector_store %arg9[%c0_54, %c0_55], %127 {strides = array<i32>} : memref<16x128xf32, #tpu.memory_space<vmem>>, vector<16x128xf32>,
    return
  }
}

</mosaic_0001>

<llo_original>
// kernel: gcn_encoder_vae_forward.1
$region0: #{gcn_encoder_vae_forward.1}
  #allocation0 [shape = 'u32[]', space=smem, size = 0x4, offset = 0x4, fixed_abs, tag = 'smem constant byte address 0x4 - core index']
  #allocation1 [shape = 'u32[72,128]{1,0:T(1,128)}', space=vmem, size = 0x9000, scoped, tag = 'internal scratch']
  %s0 = inlined_call_operand.vmem [shape: f32[4], index: 0, kind: input, shape index: {}]
  %s1 = inlined_call_operand.hbm [shape: f32[16,32], index: 1, kind: input, shape index: {}]
  %s2 = inlined_call_operand.hbm [shape: bf16[16,16], index: 2, kind: input, shape index: {}]
  %s3 = inlined_call_operand.vmem [shape: bf16[2,32,64], index: 3, kind: input, shape index: {}]
  %s4 = inlined_call_operand.vmem [shape: f32[2,1,64], index: 4, kind: input, shape index: {}]
  %s5 = inlined_call_operand.vmem [shape: bf16[2,64,32], index: 5, kind: input, shape index: {}]
  %s6 = inlined_call_operand.hbm [shape: bf16[64,128], index: 6, kind: input, shape index: {}]
  %s7 = inlined_call_operand.vmem [shape: f32[1,128], index: 7, kind: input, shape index: {}]
  %s8 = inlined_call_operand.vmem [shape: bf16[128,128], index: 8, kind: input, shape index: {}]
  %s9 = inlined_call_operand.vmem [shape: f32[16,128], index: 9, kind: output, shape index: {}]
  %s10 = sld [smem:[#allocation0]]
  $region62: #{gcn_encoder_vae_forward.1} parent=0
    _
  %s12 = ssub.s32 1, %s10
  %s13 = scalar_select 0, %s12, %s10
  $region1: #{gcn_encoder_vae_forward.1} parent=0
    #allocation2 [shape = 'u8[512]{0}', space=smem, size = 0x200, scoped, tag = 'input window, operand 0, single buffered']
    #allocation3 [shape = 's32[1]{0}', space=sflag, size = 0x4, scoped, tag = 'scoped memory for gcn_encoder_vae_forward.1']
    #allocation4 [shape = 's32[1]{0}', space=sflag, size = 0x4, scoped, tag = 'scoped memory for gcn_encoder_vae_forward.1']
    #allocation5 [shape = 'u8[8192]{0}', space=vmem, size = 0x2000, scoped, tag = 'input window, operand 1, single buffered']
    #allocation6 [shape = 'u8[4096]{0}', space=vmem, size = 0x1000, scoped, tag = 'input window, operand 2, single buffered']
    #allocation7 [shape = 's32[1]{0}', space=sflag, size = 0x4, scoped, tag = 'scoped memory for gcn_encoder_vae_forward.1']
    #allocation8 [shape = 'u8[16384]{0}', space=vmem, size = 0x4000, scoped, tag = 'input window, operand 6, single buffered']
    %14 = vsyncpa [#allocation4], 0
    %15 = vsyncpa [#allocation3], 0
    %16 = vsyncpa [#allocation7], 0
    // Predicated region
    $region2: #{gcn_encoder_vae_forward.1} parent=1 // pred_check
      _
    $region3: #{gcn_encoder_vae_forward.1} parent=1 // pred_check_branch
      %18 = sbr.rel (0) target = $region5
    $region4: #{gcn_encoder_vae_forward.1} parent=1 // pred_region
      %20 = vsyncadd [#allocation4], 0
      %s22 = sshll.u32 %s0, 4
      %s23 = int_to_ptr.vmem [resolvable:$true] %s22
      %25 = dma.vmem_to_smem %s23, 16, [#allocation2], [#allocation4]
    $region5: #{gcn_encoder_vae_forward.1} parent=1 // pred_fallthru
      _
    // Predicated region
    $region6: #{gcn_encoder_vae_forward.1} parent=1 // pred_check
      _
    $region7: #{gcn_encoder_vae_forward.1} parent=1 // pred_check_branch
      %27 = sbr.rel (0) target = $region9
    $region8: #{gcn_encoder_vae_forward.1} parent=1 // pred_region
      %29 = vsyncadd [#allocation3], 0
      %s30 = sshll.u32 %s1, 4
      %s31 = int_to_ptr.hbm [resolvable:$true] %s30
      %s32 = sshll.u32 [#allocation5], 4
      %s33 = int_to_ptr.vmem [resolvable:$true] %s32
      %38 = dma.hbm_to_vmem [thread:$0]  %s31, 256, %s33, [#allocation3], 128, 128, 8
    $region9: #{gcn_encoder_vae_forward.1} parent=1 // pred_fallthru
      _
    // Predicated region
    $region10: #{gcn_encoder_vae_forward.1} parent=1 // pred_check
      _
    $region11: #{gcn_encoder_vae_forward.1} parent=1 // pred_check_branch
      %40 = sbr.rel (0) target = $region13
    $region12: #{gcn_encoder_vae_forward.1} parent=1 // pred_region
      %42 = vsyncadd [#allocation7], 0
      %s43 = sshll.u32 %s2, 4
      %s44 = int_to_ptr.hbm [resolvable:$true] %s43
      %s45 = sshll.u32 [#allocation6], 4
      %s46 = int_to_ptr.vmem [resolvable:$true] %s45
      %51 = dma.hbm_to_vmem [thread:$0]  %s44, 128, %s46, [#allocation7], 64, 64, 4
    $region13: #{gcn_encoder_vae_forward.1} parent=1 // pred_fallthru
      _
    // Predicated region
    $region14: #{gcn_encoder_vae_forward.1} parent=1 // pred_check
      _
    $region15: #{gcn_encoder_vae_forward.1} parent=1 // pred_check_branch
      %53 = sbr.rel (0) target = $region17
    $region16: #{gcn_encoder_vae_forward.1} parent=1 // pred_region
      _
    $region17: #{gcn_encoder_vae_forward.1} parent=1 // pred_fallthru
      _
    // Predicated region
    $region18: #{gcn_encoder_vae_forward.1} parent=1 // pred_check
      _
    $region19: #{gcn_encoder_vae_forward.1} parent=1 // pred_check_branch
      %55 = sbr.rel (0) target = $region21
    $region20: #{gcn_encoder_vae_forward.1} parent=1 // pred_region
      _
    $region21: #{gcn_encoder_vae_forward.1} parent=1 // pred_fallthru
      _
    // Predicated region
    $region22: #{gcn_encoder_vae_forward.1} parent=1 // pred_check
      _
    $region23: #{gcn_encoder_vae_forward.1} parent=1 // pred_check_branch
      %57 = sbr.rel (0) target = $region25
    $region24: #{gcn_encoder_vae_forward.1} parent=1 // pred_region
      _
    $region25: #{gcn_encoder_vae_forward.1} parent=1 // pred_fallthru
      _
    // Predicated region
    $region26: #{gcn_encoder_vae_forward.1} parent=1 // pred_check
      _
    $region27: #{gcn_encoder_vae_forward.1} parent=1 // pred_check_branch
      %59 = sbr.rel (0) target = $region29
    $region28: #{gcn_encoder_vae_forward.1} parent=1 // pred_region
      %61 = vsyncadd [#allocation7], 0
      %s62 = sshll.u32 %s6, 4
      %s63 = int_to_ptr.hbm [resolvable:$true] %s62
      %s64 = sshll.u32 [#allocation8], 4
      %s65 = int_to_ptr.vmem [resolvable:$true] %s64
      %70 = dma.hbm_to_vmem [thread:$0]  %s63, 512, %s65, [#allocation7], 64, 64, 4
    $region29: #{gcn_encoder_vae_forward.1} parent=1 // pred_fallthru
      _
    // Predicated region
    $region30: #{gcn_encoder_vae_forward.1} parent=1 // pred_check
      _
    $region31: #{gcn_encoder_vae_forward.1} parent=1 // pred_check_branch
      %72 = sbr.rel (0) target = $region33
    $region32: #{gcn_encoder_vae_forward.1} parent=1 // pred_region
      _
    $region33: #{gcn_encoder_vae_forward.1} parent=1 // pred_fallthru
      _
    // Predicated region
    $region34: #{gcn_encoder_vae_forward.1} parent=1 // pred_check
      _
    $region35: #{gcn_encoder_vae_forward.1} parent=1 // pred_check_branch
      %74 = sbr.rel (0) target = $region37
    $region36: #{gcn_encoder_vae_forward.1} parent=1 // pred_region
      _
    $region37: #{gcn_encoder_vae_forward.1} parent=1 // pred_fallthru
      _
    // Predicated region
    $region38: #{gcn_encoder_vae_forward.1} parent=1 // pred_check
      _
    $region39: #{gcn_encoder_vae_forward.1} parent=1 // pred_check_branch
      %76 = sbr.rel (0) target = $region41
    $region40: #{gcn_encoder_vae_forward.1} parent=1 // pred_region
      %78 = dma.done [#allocation4], 16
    $region41: #{gcn_encoder_vae_forward.1} parent=1 // pred_fallthru
      _
    // Predicated region
    $region42: #{gcn_encoder_vae_forward.1} parent=1 // pred_check
      _
    $region43: #{gcn_encoder_vae_forward.1} parent=1 // pred_check_branch
      %80 = sbr.rel (0) target = $region45
    $region44: #{gcn_encoder_vae_forward.1} parent=1 // pred_region
      %82 = dma.done [#allocation3], 256
    $region45: #{gcn_encoder_vae_forward.1} parent=1 // pred_fallthru
      _
    // Predicated region
    $region46: #{gcn_encoder_vae_forward.1} parent=1 // pred_check
      _
    $region47: #{gcn_encoder_vae_forward.1} parent=1 // pred_check_branch
      %84 = sbr.rel (0) target = $region49
    $region48: #{gcn_encoder_vae_forward.1} parent=1 // pred_region
      %86 = dma.done [#allocation7], 128
    $region49: #{gcn_encoder_vae_forward.1} parent=1 // pred_fallthru
      _
    // Predicated region
    $region50: #{gcn_encoder_vae_forward.1} parent=1 // pred_check
      _
    $region51: #{gcn_encoder_vae_forward.1} parent=1 // pred_check_branch
      %88 = sbr.rel (0) target = $region53
    $region52: #{gcn_encoder_vae_forward.1} parent=1 // pred_region
      %90 = dma.done [#allocation7], 512
    $region53: #{gcn_encoder_vae_forward.1} parent=1 // pred_fallthru
      _
    %91 = sfence
    %v93 = vld [vmem:[#allocation6] sm:$0xf]
    %v94 = vld [vmem:[#allocation6 + $0x4] sm:$0xf]
    %v95 = vld [vmem:[#allocation5] sm:$0xff]
    %v96 = vld [vmem:[#allocation5 + $0x8] sm:$0xff]
    %s97 = sld [smem:[#allocation2]]
    %v98 = vmax.f32 %v95, 0.0
    %v99 = vmax.f32 %v96, 0.0
    %v100 = vadd.f32 %v98, 1e-07
    %v101 = vadd.f32 %v99, 1e-07
    %v102 = vstv %s97
    %v103 = vmul.f32 %v102, %v100
    %v104 = vmul.f32 %v102, %v101
    %vm105 = vcmask 261120
    %v106 = vsel %vm105, %v103, -inf
    %v107 = vsel %vm105, %v104, -inf
    %v108 = vmax.f32 %v106, %v107
    %v109 = vrot.slane %v108, 4
    %v110 = vmax.f32 %v108, %v109
    %v111 = vrot.slane %v110, 2
    %v112 = vmax.f32 %v110, %v111
    %v113 = vrot.slane %v112, 1
    %v114 = vmax.f32 %v112, %v113
    %v115 = vsub.f32 %v103, %v114
    %v116 = vsub.f32 %v104, %v114
    %v117 = vmul.f32 %v115, 1.442695
    %v118 = vpow.pop %v117
    %v119 = vmul.f32 %v116, 1.442695
    %v120 = vpow.pop %v119
    %v121 = vmul.f32 %v118, %v100
    %v122 = vmul.f32 %v120, %v101
    %125 = vrot.lane.b32.xlu0 %v121, 32
    %v126 = vpop.permute.xlu0 %125
    %127 = vrot.lane.b32.xlu0 %v122, 32
    %v128 = vpop.permute.xlu0 %127
    %v131 = vsel %vm105, %v118, %v126
    %v132 = vsel %vm105, %v120, %v128
    %v133 = vpack.c.bf16 %v132, %v131
    %v136 = vunpack.c.l.b16 %v93
    %v137 = vunpack.c.l.b16 %v94
    %v138 = vpack.c.b16 %v137, %v136
    %vm139 = vcmask 130048
    %v141 = vsel %vm139, %v138, 0
    %143 = vmatpush.bf16.msra.mxu0 0
    %144 = vmatpush.bf16.msra.mxu0 0
    %145 = vmatpush.bf16.msra.mxu0 0
    %146 = vmatpush.bf16.msra.mxu0 0
    %147 = vmatpush.bf16.msra.mxu0 0
    %148 = vmatpush.bf16.msra.mxu0 0
    %149 = vmatpush.bf16.msra.mxu0 0
    %150 = vmatpush.bf16.msra.mxu0 %v133
    %151 = vmatmul.bf16.gmra.mxu0 %v141
    %v152 = vpop.f32.mrf.mxu0
    %v153 = vadd.f32 0.0, %v152
    %v154 = vpop.f32.mrf.mxu0
    %v155 = vadd.f32 0.0, %v154
    %156 = vdwg.mxu0
    %v157 = vadd.f32 %v153, 1e-12
    %v158 = vadd.f32 %v155, 1e-12
    %v159 = vrcp.pop %v157
    %v160 = vrcp.pop %v158
    %163 = vrot.lane.b32.xlu0 %v159, 32
    %v164 = vpop.permute.xlu0 %163
    %165 = vrot.lane.b32.xlu0 %v160, 32
    %v166 = vpop.permute.xlu0 %165
    %v169 = vmul.f32 %v153, %v164
    %v170 = vmul.f32 %v155, %v166
    %173 = vrot.lane.b32.xlu0 %v95, 32
    %v174 = vpop.permute.xlu0 %173
    %175 = vrot.lane.b32.xlu0 %v96, 32
    %v176 = vpop.permute.xlu0 %175
    %v179 = vadd.f32 %v169, %v174
    %v180 = vadd.f32 %v170, %v176
    %v181 = vpack.c.bf16 %v180, %v179
    %v182 = vld [vmem:[%s3] sm:$0xf]
    %v183 = vld [vmem:[%s3 + $0x4] sm:$0xf]
    %v184 = vld [vmem:[%s3 + $0x8] sm:$0xf]
    %v185 = vld [vmem:[%s3 + $0xc] sm:$0xf]
    %v186 = vld [vmem:[%s4] sm:$0x1]
    %v188 = vperm.slane %v186, 0
    %191 = vrot.lane.b32.xlu0 %v181, 96
    %v192 = vpop.permute.xlu0 %191
    %v197 = vunpack.c.l.b16 %v182
    %v198 = vunpack.c.l.b16 %v183
    %v199 = vunpack.c.l.b16 %v184
    %v200 = vunpack.c.l.b16 %v185
    %v201 = vpack.c.b16 %v198, %v197
    %v202 = vpack.c.b16 %v200, %v199
    %v206 = vsel %vm105, %v192, 0
    %208 = vmatpush.bf16.msra.mxu0 0
    %209 = vmatpush.bf16.msra.mxu0 0
    %210 = vmatpush.bf16.msra.mxu0 0
    %211 = vmatpush.bf16.msra.mxu0 0
    %212 = vmatpush.bf16.msra.mxu0 0
    %213 = vmatpush.bf16.msra.mxu0 0
    %214 = vmatpush.bf16.msra.mxu0 %v202
    %215 = vmatpush.bf16.msra.mxu0 %v201
    %216 = vmatmul.bf16.gmra.mxu0 %v206
    %v217 = vpop.f32.mrf.mxu0
    %v218 = vadd.f32 %v188, %v217
    %v219 = vpop.f32.mrf.mxu0
    %v220 = vadd.f32 %v188, %v219
    %221 = vdwg.mxu0
    %v222 = vmax.f32 %v218, 0.0
    %v223 = vmax.f32 %v220, 0.0
    %v224 = vpack.c.bf16 %v223, %v222
    %v225 = vld [vmem:[%s5] sm:$0xf]
    %v226 = vld [vmem:[%s5 + $0x4] sm:$0xf]
    %v227 = vld [vmem:[%s5 + $0x8] sm:$0xf]
    %v228 = vld [vmem:[%s5 + $0xc] sm:$0xf]
    %v229 = vld [vmem:[%s5 + $0x10] sm:$0xf]
    %v230 = vld [vmem:[%s5 + $0x14] sm:$0xf]
    %v231 = vld [vmem:[%s5 + $0x18] sm:$0xf]
    %v232 = vld [vmem:[%s5 + $0x1c] sm:$0xf]
    %v241 = vunpack.c.l.b16 %v225
    %v242 = vunpack.c.l.b16 %v226
    %v243 = vunpack.c.l.b16 %v227
    %v244 = vunpack.c.l.b16 %v228
    %v245 = vunpack.c.l.b16 %v229
    %v246 = vunpack.c.l.b16 %v230
    %v247 = vunpack.c.l.b16 %v231
    %v248 = vunpack.c.l.b16 %v232
    %v249 = vpack.c.b16 %v242, %v241
    %v250 = vpack.c.b16 %v244, %v243
    %v251 = vpack.c.b16 %v246, %v245
    %v252 = vpack.c.b16 %v248, %v247
    %vm257 = vcmask 523264
    %v259 = vsel %vm257, %v224, 0
    %261 = vmatpush.bf16.msra.mxu0 0
    %262 = vmatpush.bf16.msra.mxu0 0
    %263 = vmatpush.bf16.msra.mxu0 0
    %264 = vmatpush.bf16.msra.mxu0 0
    %265 = vmatpush.bf16.msra.mxu0 %v252
    %266 = vmatpush.bf16.msra.mxu0 %v251
    %267 = vmatpush.bf16.msra.mxu0 %v250
    %268 = vmatpush.bf16.msra.mxu0 %v249
    %269 = vmatmul.bf16.gmra.mxu0 %v259
    %v270 = vpop.f32.mrf.mxu0
    %v271 = vadd.f32 0.0, %v270
    %v272 = vpop.f32.mrf.mxu0
    %v273 = vadd.f32 0.0, %v272
    %274 = vdwg.mxu0
    %v275 = vmax.f32 %v271, 0.0
    %v276 = vmax.f32 %v273, 0.0
    %s277 = sld [smem:[#allocation2 + $0x1]]
    %v278 = vmax.f32 %v275, 0.0
    %v279 = vmax.f32 %v276, 0.0
    %v280 = vadd.f32 %v278, 1e-07
    %v281 = vadd.f32 %v279, 1e-07
    %v282 = vstv %s277
    %v283 = vmul.f32 %v282, %v280
    %v284 = vmul.f32 %v282, %v281
    %v285 = vsel %vm105, %v283, -inf
    %v286 = vsel %vm105, %v284, -inf
    %v287 = vmax.f32 %v285, %v286
    %v288 = vrot.slane %v287, 4
    %v289 = vmax.f32 %v287, %v288
    %v290 = vrot.slane %v289, 2
    %v291 = vmax.f32 %v289, %v290
    %v292 = vrot.slane %v291, 1
    %v293 = vmax.f32 %v291, %v292
    %v294 = vsub.f32 %v283, %v293
    %v295 = vsub.f32 %v284, %v293
    %v296 = vmul.f32 %v294, 1.442695
    %v297 = vpow.pop %v296
    %v298 = vmul.f32 %v295, 1.442695
    %v299 = vpow.pop %v298
    %v300 = vmul.f32 %v297, %v280
    %v301 = vmul.f32 %v299, %v281
    %304 = vrot.lane.b32.xlu0 %v300, 32
    %v305 = vpop.permute.xlu0 %304
    %306 = vrot.lane.b32.xlu0 %v301, 32
    %v307 = vpop.permute.xlu0 %306
    %v310 = vsel %vm105, %v297, %v305
    %v311 = vsel %vm105, %v299, %v307
    %v312 = vpack.c.bf16 %v311, %v310
    %313 = vmatpush.bf16.msra.mxu0 0
    %314 = vmatpush.bf16.msra.mxu0 0
    %315 = vmatpush.bf16.msra.mxu0 0
    %316 = vmatpush.bf16.msra.mxu0 0
    %317 = vmatpush.bf16.msra.mxu0 0
    %318 = vmatpush.bf16.msra.mxu0 0
    %319 = vmatpush.bf16.msra.mxu0 0
    %320 = vmatpush.bf16.msra.mxu0 %v312
    %321 = vmatmul.bf16.gmra.mxu0 %v141
    %v322 = vpop.f32.mrf.mxu0
    %v323 = vadd.f32 0.0, %v322
    %v324 = vpop.f32.mrf.mxu0
    %v325 = vadd.f32 0.0, %v324
    %326 = vdwg.mxu0
    %v327 = vadd.f32 %v323, 1e-12
    %v328 = vadd.f32 %v325, 1e-12
    %v329 = vrcp.pop %v327
    %v330 = vrcp.pop %v328
    %333 = vrot.lane.b32.xlu0 %v329, 32
    %v334 = vpop.permute.xlu0 %333
    %335 = vrot.lane.b32.xlu0 %v330, 32
    %v336 = vpop.permute.xlu0 %335
    %v339 = vmul.f32 %v323, %v334
    %v340 = vmul.f32 %v325, %v336
    %343 = vrot.lane.b32.xlu0 %v275, 32
    %v344 = vpop.permute.xlu0 %343
    %345 = vrot.lane.b32.xlu0 %v276, 32
    %v346 = vpop.permute.xlu0 %345
    %v349 = vadd.f32 %v339, %v344
    %v350 = vadd.f32 %v340, %v346
    %v351 = vpack.c.bf16 %v350, %v349
    %s352 = scalar_lea.vmem %s3, 16
    %v353 = vld [vmem:[%s352] sm:$0xf]
    %v354 = vld [vmem:[%s352 + $0x4] sm:$0xf]
    %v355 = vld [vmem:[%s352 + $0x8] sm:$0xf]
    %v356 = vld [vmem:[%s352 + $0xc] sm:$0xf]
    %s357 = scalar_lea.vmem %s4, 1
    %v358 = vld [vmem:[%s357] sm:$0x1]
    %v360 = vperm.slane %v358, 0
    %363 = vrot.lane.b32.xlu0 %v351, 96
    %v364 = vpop.permute.xlu0 %363
    %v369 = vunpack.c.l.b16 %v353
    %v370 = vunpack.c.l.b16 %v354
    %v371 = vunpack.c.l.b16 %v355
    %v372 = vunpack.c.l.b16 %v356
    %v373 = vpack.c.b16 %v370, %v369
    %v374 = vpack.c.b16 %v372, %v371
    %v378 = vsel %vm105, %v364, 0
    %380 = vmatpush.bf16.msra.mxu0 0
    %381 = vmatpush.bf16.msra.mxu0 0
    %382 = vmatpush.bf16.msra.mxu0 0
    %383 = vmatpush.bf16.msra.mxu0 0
    %384 = vmatpush.bf16.msra.mxu0 0
    %385 = vmatpush.bf16.msra.mxu0 0
    %386 = vmatpush.bf16.msra.mxu0 %v374
    %387 = vmatpush.bf16.msra.mxu0 %v373
    %388 = vmatmul.bf16.gmra.mxu0 %v378
    %v389 = vpop.f32.mrf.mxu0
    %v390 = vadd.f32 %v360, %v389
    %v391 = vpop.f32.mrf.mxu0
    %v392 = vadd.f32 %v360, %v391
    %393 = vdwg.mxu0
    %v394 = vmax.f32 %v390, 0.0
    %v395 = vmax.f32 %v392, 0.0
    %v396 = vpack.c.bf16 %v395, %v394
    %s397 = scalar_lea.vmem %s5, 32
    %v398 = vld [vmem:[%s397] sm:$0xf]
    %v399 = vld [vmem:[%s397 + $0x4] sm:$0xf]
    %v400 = vld [vmem:[%s397 + $0x8] sm:$0xf]
    %v401 = vld [vmem:[%s397 + $0xc] sm:$0xf]
    %v402 = vld [vmem:[%s397 + $0x10] sm:$0xf]
    %v403 = vld [vmem:[%s397 + $0x14] sm:$0xf]
    %v404 = vld [vmem:[%s397 + $0x18] sm:$0xf]
    %v405 = vld [vmem:[%s397 + $0x1c] sm:$0xf]
    %v414 = vunpack.c.l.b16 %v398
    %v415 = vunpack.c.l.b16 %v399
    %v416 = vunpack.c.l.b16 %v400
    %v417 = vunpack.c.l.b16 %v401
    %v418 = vunpack.c.l.b16 %v402
    %v419 = vunpack.c.l.b16 %v403
    %v420 = vunpack.c.l.b16 %v404
    %v421 = vunpack.c.l.b16 %v405
    %v422 = vpack.c.b16 %v415, %v414
    %v423 = vpack.c.b16 %v417, %v416
    %v424 = vpack.c.b16 %v419, %v418
    %v425 = vpack.c.b16 %v421, %v420
    %v431 = vsel %vm257, %v396, 0
    %433 = vmatpush.bf16.msra.mxu0 0
    %434 = vmatpush.bf16.msra.mxu0 0
    %435 = vmatpush.bf16.msra.mxu0 0
    %436 = vmatpush.bf16.msra.mxu0 0
    %437 = vmatpush.bf16.msra.mxu0 %v425
    %438 = vmatpush.bf16.msra.mxu0 %v424
    %439 = vmatpush.bf16.msra.mxu0 %v423
    %440 = vmatpush.bf16.msra.mxu0 %v422
    %441 = vmatmul.bf16.gmra.mxu0 %v431
    %v442 = vpop.f32.mrf.mxu0
    %v443 = vadd.f32 0.0, %v442
    %v444 = vpop.f32.mrf.mxu0
    %v445 = vadd.f32 0.0, %v444
    %446 = vdwg.mxu0
    %v447 = vmax.f32 %v443, 0.0
    %v448 = vmax.f32 %v445, 0.0
    %s449 = sld [smem:[#allocation2 + $0x2]]
    %s450 = sld [smem:[#allocation2 + $0x3]]
    %v451 = vmax.f32 %v447, 0.0
    %v452 = vmax.f32 %v448, 0.0
    %v453 = vadd.f32 %v451, 1e-07
    %v454 = vadd.f32 %v452, 1e-07
    %v455 = vstv %s449
    %v456 = vmul.f32 %v455, %v453
    %v457 = vmul.f32 %v455, %v454
    %v458 = vsel %vm105, %v456, -inf
    %v459 = vsel %vm105, %v457, -inf
    %v460 = vmax.f32 %v458, %v459
    %v461 = vrot.slane %v460, 4
    %v462 = vmax.f32 %v460, %v461
    %v463 = vrot.slane %v462, 2
    %v464 = vmax.f32 %v462, %v463
    %v465 = vrot.slane %v464, 1
    %v466 = vmax.f32 %v464, %v465
    %v467 = vsub.f32 %v456, %v466
    %v468 = vsub.f32 %v457, %v466
    %v469 = vmul.f32 %v467, 1.442695
    %v470 = vpow.pop %v469
    %v471 = vmul.f32 %v468, 1.442695
    %v472 = vpow.pop %v471
    %v473 = vstv %s450
    %v474 = vmul.f32 %v473, %v453
    %v475 = vmul.f32 %v473, %v454
    %v476 = vsel %vm105, %v474, -inf
    %v477 = vsel %vm105, %v475, -inf
    %v478 = vmax.f32 %v476, %v477
    %v479 = vrot.slane %v478, 4
    %v480 = vmax.f32 %v478, %v479
    %v481 = vrot.slane %v480, 2
    %v482 = vmax.f32 %v480, %v481
    %v483 = vrot.slane %v482, 1
    %v484 = vmax.f32 %v482, %v483
    %v485 = vsub.f32 %v474, %v484
    %v486 = vsub.f32 %v475, %v484
    %v487 = vmul.f32 %v485, 1.442695
    %v488 = vpow.pop %v487
    %v489 = vmul.f32 %v486, 1.442695
    %v490 = vpow.pop %v489
    %v491 = vmul.f32 %v470, %v453
    %v492 = vmul.f32 %v472, %v454
    %v493 = vmul.f32 %v488, %v453
    %v494 = vmul.f32 %v490, %v454
    %497 = vrot.lane.b32.xlu0 %v488, 32
    %v498 = vpop.permute.xlu0 %497
    %499 = vrot.lane.b32.xlu0 %v490, 32
    %v500 = vpop.permute.xlu0 %499
    %505 = vrot.lane.b32.xlu0 %v491, 64
    %v506 = vpop.permute.xlu0 %505
    %507 = vrot.lane.b32.xlu0 %v492, 64
    %v508 = vpop.permute.xlu0 %507
    %513 = vrot.lane.b32.xlu0 %v493, 96
    %v514 = vpop.permute.xlu0 %513
    %515 = vrot.lane.b32.xlu0 %v494, 96
    %v516 = vpop.permute.xlu0 %515
    %v519 = vsel %vm105, %v470, %v498
    %v520 = vsel %vm105, %v472, %v500
    %v521 = vsel %vm257, %v519, %v506
    %v522 = vsel %vm257, %v520, %v508
    %vm523 = vcmask 785408
    %v524 = vsel %vm523, %v521, %v514
    %v525 = vsel %vm523, %v522, %v516
    %v526 = vpack.c.bf16 %v525, %v524
    %527 = vmatpush.bf16.msra.mxu0 0
    %528 = vmatpush.bf16.msra.mxu0 0
    %529 = vmatpush.bf16.msra.mxu0 0
    %530 = vmatpush.bf16.msra.mxu0 0
    %531 = vmatpush.bf16.msra.mxu0 0
    %532 = vmatpush.bf16.msra.mxu0 0
    %533 = vmatpush.bf16.msra.mxu0 0
    %534 = vmatpush.bf16.msra.mxu0 %v526
    %535 = vmatmul.bf16.gmra.mxu0 %v141
    %v536 = vpop.f32.mrf.mxu0
    %v537 = vadd.f32 0.0, %v536
    %v538 = vpop.f32.mrf.mxu0
    %v539 = vadd.f32 0.0, %v538
    %540 = vdwg.mxu0
    %543 = vrot.lane.b32.xlu0 %v447, 32
    %v544 = vpop.permute.xlu0 %543
    %545 = vrot.lane.b32.xlu0 %v448, 32
    %v546 = vpop.permute.xlu0 %545
    %v549 = vsel %vm105, %v447, %v544
    %v550 = vsel %vm105, %v448, %v546
    %v551 = vadd.f32 %v537, 1e-12
    %v552 = vadd.f32 %v539, 1e-12
    %v553 = vrcp.pop %v551
    %v554 = vrcp.pop %v552
    %557 = vrot.lane.b32.xlu0 %v553, 64
    %v558 = vpop.permute.xlu0 %557
    %559 = vrot.lane.b32.xlu0 %v554, 64
    %v560 = vpop.permute.xlu0 %559
    %v563 = vmul.f32 %v537, %v558
    %v564 = vmul.f32 %v539, %v560
    %567 = vrot.lane.b32.xlu0 %v549, 64
    %v568 = vpop.permute.xlu0 %567
    %569 = vrot.lane.b32.xlu0 %v550, 64
    %v570 = vpop.permute.xlu0 %569
    %v573 = vadd.f32 %v563, %v568
    %v574 = vadd.f32 %v564, %v570
    %v575 = vpack.c.bf16 %v574, %v573
    %v576 = vld [vmem:[#allocation8] sm:$0xf]
    %v577 = vld [vmem:[#allocation8 + $0x4] sm:$0xf]
    %v578 = vld [vmem:[#allocation8 + $0x8] sm:$0xf]
    %v579 = vld [vmem:[#allocation8 + $0xc] sm:$0xf]
    %v580 = vld [vmem:[#allocation8 + $0x10] sm:$0xf]
    %v581 = vld [vmem:[#allocation8 + $0x14] sm:$0xf]
    %v582 = vld [vmem:[#allocation8 + $0x18] sm:$0xf]
    %v583 = vld [vmem:[#allocation8 + $0x1c] sm:$0xf]
    %v584 = vld [vmem:[%s7] sm:$0x1]
    %v586 = vperm.slane %v584, 0
    %589 = vrot.lane.b32.xlu0 %v575, 64
    %v590 = vpop.permute.xlu0 %589
    %v599 = vunpack.c.l.b16 %v576
    %v600 = vunpack.c.l.b16 %v577
    %v601 = vunpack.c.l.b16 %v578
    %v602 = vunpack.c.l.b16 %v579
    %v603 = vunpack.c.l.b16 %v580
    %v604 = vunpack.c.l.b16 %v581
    %v605 = vunpack.c.l.b16 %v582
    %v606 = vunpack.c.l.b16 %v583
    %v607 = vpack.c.b16 %v600, %v599
    %v608 = vpack.c.b16 %v602, %v601
    %v609 = vpack.c.b16 %v604, %v603
    %v610 = vpack.c.b16 %v606, %v605
    %v616 = vsel %vm257, %v590, 0
    %618 = vmatpush.bf16.msra.mxu0 0
    %619 = vmatpush.bf16.msra.mxu0 0
    %620 = vmatpush.bf16.msra.mxu0 0
    %621 = vmatpush.bf16.msra.mxu0 0
    %622 = vmatpush.bf16.msra.mxu0 %v610
    %623 = vmatpush.bf16.msra.mxu0 %v609
    %624 = vmatpush.bf16.msra.mxu0 %v608
    %625 = vmatpush.bf16.msra.mxu0 %v607
    %626 = vmatmul.bf16.gmra.mxu0 %v616
    %v627 = vpop.f32.mrf.mxu0
    %v628 = vadd.f32 %v586, %v627
    %v629 = vpop.f32.mrf.mxu0
    %v630 = vadd.f32 %v586, %v629
    %631 = vdwg.mxu0
    %v632 = vmax.f32 %v628, 0.0
    %v633 = vmax.f32 %v630, 0.0
    %v634 = vpack.c.bf16 %v633, %v632
    %v635 = vld [vmem:[%s8] sm:$0xf]
    %v636 = vld [vmem:[%s8 + $0x4] sm:$0xf]
    %v637 = vld [vmem:[%s8 + $0x8] sm:$0xf]
    %v638 = vld [vmem:[%s8 + $0xc] sm:$0xf]
    %v639 = vld [vmem:[%s8 + $0x10] sm:$0xf]
    %v640 = vld [vmem:[%s8 + $0x14] sm:$0xf]
    %v641 = vld [vmem:[%s8 + $0x18] sm:$0xf]
    %v642 = vld [vmem:[%s8 + $0x1c] sm:$0xf]
    %v643 = vld [vmem:[%s8 + $0x20] sm:$0xf]
    %v644 = vld [vmem:[%s8 + $0x24] sm:$0xf]
    %v645 = vld [vmem:[%s8 + $0x28] sm:$0xf]
    %v646 = vld [vmem:[%s8 + $0x2c] sm:$0xf]
    %v647 = vld [vmem:[%s8 + $0x30] sm:$0xf]
    %v648 = vld [vmem:[%s8 + $0x34] sm:$0xf]
    %v649 = vld [vmem:[%s8 + $0x38] sm:$0xf]
    %v650 = vld [vmem:[%s8 + $0x3c] sm:$0xf]
    %v667 = vunpack.c.l.b16 %v635
    %v668 = vunpack.c.l.b16 %v636
    %v669 = vunpack.c.l.b16 %v637
    %v670 = vunpack.c.l.b16 %v638
    %v671 = vunpack.c.l.b16 %v639
    %v672 = vunpack.c.l.b16 %v640
    %v673 = vunpack.c.l.b16 %v641
    %v674 = vunpack.c.l.b16 %v642
    %v675 = vunpack.c.l.b16 %v643
    %v676 = vunpack.c.l.b16 %v644
    %v677 = vunpack.c.l.b16 %v645
    %v678 = vunpack.c.l.b16 %v646
    %v679 = vunpack.c.l.b16 %v647
    %v680 = vunpack.c.l.b16 %v648
    %v681 = vunpack.c.l.b16 %v649
    %v682 = vunpack.c.l.b16 %v650
    %v683 = vpack.c.b16 %v668, %v667
    %v684 = vpack.c.b16 %v670, %v669
    %v685 = vpack.c.b16 %v672, %v671
    %v686 = vpack.c.b16 %v674, %v673
    %v687 = vpack.c.b16 %v676, %v675
    %v688 = vpack.c.b16 %v678, %v677
    %v689 = vpack.c.b16 %v680, %v679
    %v690 = vpack.c.b16 %v682, %v681
    %699 = vmatpush.bf16.msra.mxu0 %v690
    %700 = vmatpush.bf16.msra.mxu0 %v689
    %701 = vmatpush.bf16.msra.mxu0 %v688
    %702 = vmatpush.bf16.msra.mxu0 %v687
    %703 = vmatpush.bf16.msra.mxu0 %v686
    %704 = vmatpush.bf16.msra.mxu0 %v685
    %705 = vmatpush.bf16.msra.mxu0 %v684
    %706 = vmatpush.bf16.msra.mxu0 %v683
    %707 = vmatmul.bf16.gmra.mxu0 %v634
    %v708 = vpop.f32.mrf.mxu0
    %v709 = vadd.f32 0.0, %v708
    %v710 = vpop.f32.mrf.mxu0
    %v711 = vadd.f32 0.0, %v710
    %712 = vdwg.mxu0
    %713 = vst [vmem:[%s9] sm:$0xff] %v709
    %714 = vst [vmem:[%s9 + $0x8] sm:$0xff] %v711
    // Predicated region
    $region54: #{gcn_encoder_vae_forward.1} parent=1 // pred_check
      _
    $region55: #{gcn_encoder_vae_forward.1} parent=1 // pred_check_branch
      %716 = sbr.rel (0) target = $region57
    $region56: #{gcn_encoder_vae_forward.1} parent=1 // pred_region
      _
    $region57: #{gcn_encoder_vae_forward.1} parent=1 // pred_fallthru
      _
    // Predicated region
    $region58: #{gcn_encoder_vae_forward.1} parent=1 // pred_check
      _
    $region59: #{gcn_encoder_vae_forward.1} parent=1 // pred_check_branch
      %718 = sbr.rel (0) target = $region61
    $region60: #{gcn_encoder_vae_forward.1} parent=1 // pred_region
      _
    $region61: #{gcn_encoder_vae_forward.1} parent=1 // pred_fallthru
      _
    %719 = vsyncpa [#allocation3], 1
    %720 = vsyncpa [#allocation7], 1
    %721 = vsyncpa [#allocation4], 1

</llo_original>
